<compile_context>
chip_gen: v6e
topology: v6e:2x2x1
jax: 0.10.0
libtpu: 0.0.40
codegen_flags: <defaults>
</compile_context>

<pallas_src>
import jax
import jax.numpy as jnp
from jax import lax
from jax.experimental import pallas as pl
from jax.experimental.pallas import tpu as pltpu


def encoder_kernel(chars_ref, tok_ref, wbig_ref, bbig_ref,
                   wtok_ref, btok_ref, whh_ref,
                   out_ref, h_ref, c_ref):
    S, Bp, H = out_ref.shape
    n_chars = wbig_ref.shape[0]
    N = S * Bp

    # --- fused char "gather": one-hot @ (pre-folded char->gates table) on MXU.
    # chars_ref is (S*Bp, 1) int32, time-major; pad rows carry idx = -1, whose
    # one-hot row is all zeros, so their gx row is just b_big (harmless,
    # discarded by the wrapper).
    idx = chars_ref[...]                                            # (N, 1)
    iota = lax.broadcasted_iota(jnp.int32, (N, n_chars), 1)
    onehot = (idx == iota).astype(jnp.bfloat16)                     # (N, n_chars)
    gx = jnp.dot(onehot, wbig_ref[...],
                 preferred_element_type=jnp.float32) + bbig_ref[...]  # (N, 4H) f32

    # --- h0 = relu(token_linear(tok)); c0 = 0 ---------------------------------
    h = jnp.maximum(
        jnp.dot(tok_ref[...], wtok_ref[...],
                preferred_element_type=jnp.float32) + btok_ref[...],
        0.0)                                                         # (Bp, H) f32
    c = jnp.zeros_like(h)

    # --- hoisted per-lane constants for the single-EUP-pass gate trick --------
    #   sigmoid(x) = 0.5 * tanh(0.5 * x) + 0.5   (i, f, o lane groups)
    #   tanh(x)    = 1.0 * tanh(1.0 * x) + 0.0   (g lane group)
    lane = lax.broadcasted_iota(jnp.int32, (1, 4 * H), 1)
    is_g = jnp.logical_and(lane >= 2 * H, lane < 3 * H)
    scale = jnp.where(is_g, 1.0, 0.5).astype(jnp.float32)           # (1, 4H)
    shift = jnp.where(is_g, 0.0, 0.5).astype(jnp.float32)           # (1, 4H)

    whh = whh_ref[...]                                               # (H, 4H) bf16

    # --- LSTM recurrence, fully unrolled (S small & static) -------------------
    for t in range(S):
        g = gx[t * Bp:(t + 1) * Bp, :] + jnp.dot(
            h.astype(jnp.bfloat16), whh, preferred_element_type=jnp.float32)
        tg = jnp.tanh(g * scale)          # ONE EUP pass for all 4 gates
        gates = scale * tg + shift        # VPU: recovers sigmoid / tanh lanes
        i_g = gates[:, 0:H]
        f_g = gates[:, H:2 * H]
        c_g = gates[:, 2 * H:3 * H]
        o_g = gates[:, 3 * H:4 * H]
        c = f_g * c + i_g * c_g
        h = o_g * jnp.tanh(c)
        out_ref[t] = h                    # static leading-axis (8,128)-tile store

    h_ref[...] = h
    c_ref[...] = c


def encoder_pallas(input_chars, emb_table, tok,
                   w_char, b_char, w_tok, b_tok, w_ih, w_hh, b_lstm):
    B, S = input_chars.shape
    H = w_hh.shape[0]
    Bp = -(-B // 8) * 8                      # pad batch to the f32 sublane count

    # --- f32 fold of the linear preamble (tiny wrapper-side XLA matmuls) ------
    w_big = (emb_table @ w_char) @ w_ih                   # (n_chars, 4H) f32
    b_big = b_char @ w_ih + b_lstm                        # (1, 4H)      f32

    # --- time-major, batch-padded char indices (pad idx = -1 -> zero one-hot) -
    chars_t = jnp.transpose(input_chars.astype(jnp.int32), (1, 0))   # (S, B)
    chars_t = jnp.pad(chars_t, ((0, 0), (0, Bp - B)), constant_values=-1)
    chars_tm = chars_t.reshape(S * Bp, 1)

    # --- zero-padded token embedding -------------------------------------------
    tok_pad = jnp.pad(tok, ((0, Bp - B), (0, 0)))

    # bf16 MXU operands are cast once here (free XLA plumbing); biases stay f32.
    vmem = pl.BlockSpec(memory_space=pltpu.MemorySpace.VMEM)
    out_tm, h, c = pl.pallas_call(
        encoder_kernel,
        out_shape=(jax.ShapeDtypeStruct((S, Bp, H), jnp.float32),
                   jax.ShapeDtypeStruct((Bp, H), jnp.float32),
                   jax.ShapeDtypeStruct((Bp, H), jnp.float32)),
        in_specs=[vmem] * 7,
        out_specs=(vmem, vmem, vmem),
    )(chars_tm,
      tok_pad.astype(jnp.bfloat16),
      w_big.astype(jnp.bfloat16),
      b_big.astype(jnp.float32),
      w_tok.astype(jnp.bfloat16),
      b_tok.astype(jnp.float32),
      w_hh.astype(jnp.bfloat16))

    # (S, Bp, H) time-major -> (B, S, H) batch_first; drop the pad rows.
    out = jnp.transpose(out_tm, (1, 0, 2))[:B]
    return out, h[:B], c[:B]


def encoder_forward(emb_table, input_chars, token_embedding,
                    w_char, b_char, w_tok, b_tok, w_ih, w_hh, b_lstm):
    out, h, c = encoder_pallas(input_chars, emb_table, token_embedding,
                               w_char, b_char, w_tok, b_tok, w_ih, w_hh, b_lstm)
    # Match PyTorch: (output, (hidden, cell)), hidden/cell shaped (1, B, H).
    return out, (h[None, :, :], c[None, :, :])


def encoder_reference(emb_table, input_chars, token_embedding,
                      w_char, b_char, w_tok, b_tok, w_ih, w_hh, b_lstm):
    x = jnp.take(emb_table, input_chars, axis=0)
    xc = x @ w_char + b_char
    h = jnp.maximum(token_embedding @ w_tok + b_tok, 0.0)
    c = jnp.zeros_like(h)
    H = w_hh.shape[0]
    outs = []
    for t in range(x.shape[1]):
        g = xc[:, t, :] @ w_ih + b_lstm + h @ w_hh
        i = jax.nn.sigmoid(g[:, :H])
        f = jax.nn.sigmoid(g[:, H:2 * H])
        gg = jnp.tanh(g[:, 2 * H:3 * H])
        o = jax.nn.sigmoid(g[:, 3 * H:])
        c = f * c + i * gg
        h = o * jnp.tanh(c)
        outs.append(h)
    return jnp.stack(outs, axis=1), (h[None], c[None])


if __name__ == "__main__":
    # Module hyperparameters (small, consistent with the forward pass):
    n_characters, input_size, hidden_size, embedding_dim = 30, 32, 32, 16
    B, S = 2, 8

    key = jax.random.PRNGKey(0)
    ks = jax.random.split(key, 10)

    # Deterministic synthetic parameters (shapes from Encoder.__init__).
    emb_table = 0.1 * jax.random.normal(ks[0], (n_characters, input_size), jnp.float32)
    w_char = 0.1 * jax.random.normal(ks[1], (input_size, input_size), jnp.float32)   # (in, out)
    b_char = 0.1 * jax.random.normal(ks[2], (1, input_size), jnp.float32)
    w_tok = 0.1 * jax.random.normal(ks[3], (embedding_dim, hidden_size), jnp.float32)
    b_tok = 0.1 * jax.random.normal(ks[4], (1, hidden_size), jnp.float32)
    # LSTM weights, PyTorch gate order (i, f, g, o); stored transposed (in, 4H).
    w_ih = 0.1 * jax.random.normal(ks[5], (input_size, 4 * hidden_size), jnp.float32)
    w_hh = 0.1 * jax.random.normal(ks[6], (hidden_size, 4 * hidden_size), jnp.float32)
    b_lstm = 0.1 * jax.random.normal(ks[7], (1, 4 * hidden_size), jnp.float32)        # b_ih + b_hh combined

    # Deterministic example inputs.
    input_chars = jax.random.randint(ks[8], (B, S), 0, n_characters, dtype=jnp.int32)
    token_embedding = jax.random.normal(ks[9], (B, embedding_dim), jnp.float32)

    output, (hidden, cell) = encoder_forward(
        emb_table, input_chars, token_embedding,
        w_char, b_char, w_tok, b_tok, w_ih, w_hh, b_lstm)
    jax.block_until_ready((output, hidden, cell))

    ref_out, (ref_h, ref_c) = encoder_reference(
        emb_table, input_chars, token_embedding,
        w_char, b_char, w_tok, b_tok, w_ih, w_hh, b_lstm)

    assert output.shape == (B, S, hidden_size)
    assert hidden.shape == (1, B, hidden_size) and cell.shape == (1, B, hidden_size)
    # Tolerance accounts for bf16 MXU operands (f32 accumulation); the f32-folded
    # preamble keeps the gx path to a single bf16 rounding per element.
    assert jnp.allclose(output, ref_out, atol=2e-2, rtol=2e-2)
    assert jnp.allclose(hidden, ref_h, atol=2e-2, rtol=2e-2)
    assert jnp.allclose(cell, ref_c, atol=2e-2, rtol=2e-2)

    print("KERNEL_OK")
</pallas_src>

<mosaic_0001>
module attributes {stable_mosaic.version = 11 : i64} {
  func.func @encoder_kernel(%arg0: memref<64x1xi32, #tpu.memory_space<vmem>>, %arg1: memref<8x16xbf16, #tpu.memory_space<vmem>>, %arg2: memref<30x128xbf16, #tpu.memory_space<vmem>>, %arg3: memref<1x128xf32, #tpu.memory_space<vmem>>, %arg4: memref<16x32xbf16, #tpu.memory_space<vmem>>, %arg5: memref<1x32xf32, #tpu.memory_space<vmem>>, %arg6: memref<32x128xbf16, #tpu.memory_space<vmem>>, %arg7: memref<8x8x32xf32, #tpu.memory_space<vmem>>, %arg8: memref<8x32xf32, #tpu.memory_space<vmem>>, %arg9: memref<8x32xf32, #tpu.memory_space<vmem>>) attributes {dimension_semantics = [], scalar_prefetch = 0 : i64, scratch_operands = 0 : i64, tpu.core_type = #tpu.core_type<tc>} {
    %c0 = arith.constant 0 : index
    %c0_0 = arith.constant 0 : index
    %0 = vector.load %arg0[%c0, %c0_0] : memref<64x1xi32, #tpu.memory_space<vmem>>, vector<64x1xi32>
    %1 = tpu.iota {dimensions = array<i32: 1>} : vector<64x30xi32>
    %2 = vector.broadcast %0 : vector<64x1xi32> to vector<64x30xi32>
    %3 = arith.cmpi eq, %2, %1 : vector<64x30xi32>
    %4 = arith.extui %3 : vector<64x30xi1> to vector<64x30xi32>
    %5 = arith.sitofp %4 : vector<64x30xi32> to vector<64x30xf32>
    %6 = arith.truncf %5 : vector<64x30xf32> to vector<64x30xbf16>
    %c0_1 = arith.constant 0 : index
    %c0_2 = arith.constant 0 : index
    %7 = vector.load %arg2[%c0_1, %c0_2] : memref<30x128xbf16, #tpu.memory_space<vmem>>, vector<30x128xbf16>
    %cst = arith.constant dense<0.000000e+00> : vector<64x128xf32>
    %8 = tpu.matmul %6, %7, %cst {dimension_numbers = #tpu.dot_dimension_numbers<[1], [0], [0], [1], [0, 0, 1, 1], [], []>} : vector<64x30xbf16>, vector<30x128xbf16>, vector<64x128xf32> -> vector<64x128xf32>
    %c0_3 = arith.constant 0 : index
    %c0_4 = arith.constant 0 : index
    %9 = vector.load %arg3[%c0_3, %c0_4] : memref<1x128xf32, #tpu.memory_space<vmem>>, vector<1x128xf32>
    %10 = vector.broadcast %9 : vector<1x128xf32> to vector<64x128xf32>
    %11 = arith.addf %8, %10 : vector<64x128xf32>
    %c0_5 = arith.constant 0 : index
    %c0_6 = arith.constant 0 : index
    %12 = vector.load %arg1[%c0_5, %c0_6] : memref<8x16xbf16, #tpu.memory_space<vmem>>, vector<8x16xbf16>
    %c0_7 = arith.constant 0 : index
    %c0_8 = arith.constant 0 : index
    %13 = vector.load %arg4[%c0_7, %c0_8] : memref<16x32xbf16, #tpu.memory_space<vmem>>, vector<16x32xbf16>
    %cst_9 = arith.constant dense<0.000000e+00> : vector<8x32xf32>
    %14 = tpu.matmul %12, %13, %cst_9 {dimension_numbers = #tpu.dot_dimension_numbers<[1], [0], [0], [1], [0, 0, 1, 1], [], []>} : vector<8x16xbf16>, vector<16x32xbf16>, vector<8x32xf32> -> vector<8x32xf32>
    %c0_10 = arith.constant 0 : index
    %c0_11 = arith.constant 0 : index
    %15 = vector.load %arg5[%c0_10, %c0_11] : memref<1x32xf32, #tpu.memory_space<vmem>>, vector<1x32xf32>
    %16 = vector.broadcast %15 : vector<1x32xf32> to vector<8x32xf32>
    %17 = arith.addf %14, %16 : vector<8x32xf32>
    %cst_12 = arith.constant 0.000000e+00 : f32
    %18 = vector.broadcast %cst_12 : f32 to vector<8x32xf32>
    %19 = arith.maximumf %17, %18 : vector<8x32xf32>
    %cst_13 = arith.constant 0.000000e+00 : f32
    %20 = vector.broadcast %cst_13 : f32 to vector<8x32xf32>
    %21 = tpu.iota {dimensions = array<i32: 1>} : vector<1x128xi32>
    %c64_i32 = arith.constant 64 : i32
    %22 = vector.broadcast %c64_i32 : i32 to vector<1x128xi32>
    %23 = arith.cmpi sge, %21, %22 : vector<1x128xi32>
    %c96_i32 = arith.constant 96 : i32
    %24 = vector.broadcast %c96_i32 : i32 to vector<1x128xi32>
    %25 = arith.cmpi slt, %21, %24 : vector<1x128xi32>
    %26 = arith.andi %23, %25 : vector<1x128xi1>
    %cst_14 = arith.constant 1.000000e+00 : f32
    %cst_15 = arith.constant 5.000000e-01 : f32
    %27 = vector.broadcast %cst_14 : f32 to vector<1x128xf32>
    %28 = vector.broadcast %cst_15 : f32 to vector<1x128xf32>
    %29 = arith.select %26, %27, %28 : vector<1x128xi1>, vector<1x128xf32>
    %cst_16 = arith.constant 0.000000e+00 : f32
    %cst_17 = arith.constant 5.000000e-01 : f32
    %30 = vector.broadcast %cst_16 : f32 to vector<1x128xf32>
    %31 = vector.broadcast %cst_17 : f32 to vector<1x128xf32>
    %32 = arith.select %26, %30, %31 : vector<1x128xi1>, vector<1x128xf32>
    %c0_18 = arith.constant 0 : index
    %c0_19 = arith.constant 0 : index
    %33 = vector.load %arg6[%c0_18, %c0_19] : memref<32x128xbf16, #tpu.memory_space<vmem>>, vector<32x128xbf16>
    %34 = vector.extract_strided_slice %11 {offsets = [0, 0], sizes = [8, 128], strides = [1, 1]} : vector<64x128xf32> to vector<8x128xf32>
    %35 = arith.truncf %19 : vector<8x32xf32> to vector<8x32xbf16>
    %cst_20 = arith.constant dense<0.000000e+00> : vector<8x128xf32>
    %36 = tpu.matmul %35, %33, %cst_20 {dimension_numbers = #tpu.dot_dimension_numbers<[1], [0], [0], [1], [0, 0, 1, 1], [], []>} : vector<8x32xbf16>, vector<32x128xbf16>, vector<8x128xf32> -> vector<8x128xf32>
    %37 = arith.addf %34, %36 : vector<8x128xf32>
    %38 = vector.broadcast %29 : vector<1x128xf32> to vector<8x128xf32>
    %39 = arith.mulf %37, %38 : vector<8x128xf32>
    %40 = math.tanh %39 : vector<8x128xf32>
    %41 = vector.broadcast %29 : vector<1x128xf32> to vector<8x128xf32>
    %42 = arith.mulf %41, %40 : vector<8x128xf32>
    %43 = vector.broadcast %32 : vector<1x128xf32> to vector<8x128xf32>
    %44 = arith.addf %42, %43 : vector<8x128xf32>
    %45 = vector.extract_strided_slice %44 {offsets = [0, 0], sizes = [8, 32], strides = [1, 1]} : vector<8x128xf32> to vector<8x32xf32>
    %46 = vector.extract_strided_slice %44 {offsets = [0, 32], sizes = [8, 32], strides = [1, 1]} : vector<8x128xf32> to vector<8x32xf32>
    %47 = vector.extract_strided_slice %44 {offsets = [0, 64], sizes = [8, 32], strides = [1, 1]} : vector<8x128xf32> to vector<8x32xf32>
    %48 = vector.extract_strided_slice %44 {offsets = [0, 96], sizes = [8, 32], strides = [1, 1]} : vector<8x128xf32> to vector<8x32xf32>
    %49 = arith.mulf %46, %20 : vector<8x32xf32>
    %50 = arith.mulf %45, %47 : vector<8x32xf32>
    %51 = arith.addf %49, %50 : vector<8x32xf32>
    %52 = math.tanh %51 : vector<8x32xf32>
    %53 = arith.mulf %48, %52 : vector<8x32xf32>
    %c0_21 = arith.constant 0 : index
    %c0_22 = arith.constant 0 : index
    %c0_23 = arith.constant 0 : index
    %54 = vector.load %arg7[%c0_21, %c0_22, %c0_23] : memref<8x8x32xf32, #tpu.memory_space<vmem>>, vector<1x8x32xf32>
    %55 = vector.shape_cast %54 : vector<1x8x32xf32> to vector<8x32xf32>
    %56 = vector.shape_cast %53 : vector<8x32xf32> to vector<1x8x32xf32>
    tpu.vector_store %arg7[%c0_21, %c0_22, %c0_23], %56 {strides = array<i32>} : memref<8x8x32xf32, #tpu.memory_space<vmem>>, vector<1x8x32xf32>,
    %57 = vector.extract_strided_slice %11 {offsets = [8, 0], sizes = [8, 128], strides = [1, 1]} : vector<64x128xf32> to vector<8x128xf32>
    %58 = arith.truncf %53 : vector<8x32xf32> to vector<8x32xbf16>
    %cst_24 = arith.constant dense<0.000000e+00> : vector<8x128xf32>
    %59 = tpu.matmul %58, %33, %cst_24 {dimension_numbers = #tpu.dot_dimension_numbers<[1], [0], [0], [1], [0, 0, 1, 1], [], []>} : vector<8x32xbf16>, vector<32x128xbf16>, vector<8x128xf32> -> vector<8x128xf32>
    %60 = arith.addf %57, %59 : vector<8x128xf32>
    %61 = vector.broadcast %29 : vector<1x128xf32> to vector<8x128xf32>
    %62 = arith.mulf %60, %61 : vector<8x128xf32>
    %63 = math.tanh %62 : vector<8x128xf32>
    %64 = vector.broadcast %29 : vector<1x128xf32> to vector<8x128xf32>
    %65 = arith.mulf %64, %63 : vector<8x128xf32>
    %66 = vector.broadcast %32 : vector<1x128xf32> to vector<8x128xf32>
    %67 = arith.addf %65, %66 : vector<8x128xf32>
    %68 = vector.extract_strided_slice %67 {offsets = [0, 0], sizes = [8, 32], strides = [1, 1]} : vector<8x128xf32> to vector<8x32xf32>
    %69 = vector.extract_strided_slice %67 {offsets = [0, 32], sizes = [8, 32], strides = [1, 1]} : vector<8x128xf32> to vector<8x32xf32>
    %70 = vector.extract_strided_slice %67 {offsets = [0, 64], sizes = [8, 32], strides = [1, 1]} : vector<8x128xf32> to vector<8x32xf32>
    %71 = vector.extract_strided_slice %67 {offsets = [0, 96], sizes = [8, 32], strides = [1, 1]} : vector<8x128xf32> to vector<8x32xf32>
    %72 = arith.mulf %69, %51 : vector<8x32xf32>
    %73 = arith.mulf %68, %70 : vector<8x32xf32>
    %74 = arith.addf %72, %73 : vector<8x32xf32>
    %75 = math.tanh %74 : vector<8x32xf32>
    %76 = arith.mulf %71, %75 : vector<8x32xf32>
    %c1 = arith.constant 1 : index
    %c0_25 = arith.constant 0 : index
    %c0_26 = arith.constant 0 : index
    %77 = vector.load %arg7[%c1, %c0_25, %c0_26] : memref<8x8x32xf32, #tpu.memory_space<vmem>>, vector<1x8x32xf32>
    %78 = vector.shape_cast %77 : vector<1x8x32xf32> to vector<8x32xf32>
    %79 = vector.shape_cast %76 : vector<8x32xf32> to vector<1x8x32xf32>
    tpu.vector_store %arg7[%c1, %c0_25, %c0_26], %79 {strides = array<i32>} : memref<8x8x32xf32, #tpu.memory_space<vmem>>, vector<1x8x32xf32>,
    %80 = vector.extract_strided_slice %11 {offsets = [16, 0], sizes = [8, 128], strides = [1, 1]} : vector<64x128xf32> to vector<8x128xf32>
    %81 = arith.truncf %76 : vector<8x32xf32> to vector<8x32xbf16>
    %cst_27 = arith.constant dense<0.000000e+00> : vector<8x128xf32>
    %82 = tpu.matmul %81, %33, %cst_27 {dimension_numbers = #tpu.dot_dimension_numbers<[1], [0], [0], [1], [0, 0, 1, 1], [], []>} : vector<8x32xbf16>, vector<32x128xbf16>, vector<8x128xf32> -> vector<8x128xf32>
    %83 = arith.addf %80, %82 : vector<8x128xf32>
    %84 = vector.broadcast %29 : vector<1x128xf32> to vector<8x128xf32>
    %85 = arith.mulf %83, %84 : vector<8x128xf32>
    %86 = math.tanh %85 : vector<8x128xf32>
    %87 = vector.broadcast %29 : vector<1x128xf32> to vector<8x128xf32>
    %88 = arith.mulf %87, %86 : vector<8x128xf32>
    %89 = vector.broadcast %32 : vector<1x128xf32> to vector<8x128xf32>
    %90 = arith.addf %88, %89 : vector<8x128xf32>
    %91 = vector.extract_strided_slice %90 {offsets = [0, 0], sizes = [8, 32], strides = [1, 1]} : vector<8x128xf32> to vector<8x32xf32>
    %92 = vector.extract_strided_slice %90 {offsets = [0, 32], sizes = [8, 32], strides = [1, 1]} : vector<8x128xf32> to vector<8x32xf32>
    %93 = vector.extract_strided_slice %90 {offsets = [0, 64], sizes = [8, 32], strides = [1, 1]} : vector<8x128xf32> to vector<8x32xf32>
    %94 = vector.extract_strided_slice %90 {offsets = [0, 96], sizes = [8, 32], strides = [1, 1]} : vector<8x128xf32> to vector<8x32xf32>
    %95 = arith.mulf %92, %74 : vector<8x32xf32>
    %96 = arith.mulf %91, %93 : vector<8x32xf32>
    %97 = arith.addf %95, %96 : vector<8x32xf32>
    %98 = math.tanh %97 : vector<8x32xf32>
    %99 = arith.mulf %94, %98 : vector<8x32xf32>
    %c2 = arith.constant 2 : index
    %c0_28 = arith.constant 0 : index
    %c0_29 = arith.constant 0 : index
    %100 = vector.load %arg7[%c2, %c0_28, %c0_29] : memref<8x8x32xf32, #tpu.memory_space<vmem>>, vector<1x8x32xf32>
    %101 = vector.shape_cast %100 : vector<1x8x32xf32> to vector<8x32xf32>
    %102 = vector.shape_cast %99 : vector<8x32xf32> to vector<1x8x32xf32>
    tpu.vector_store %arg7[%c2, %c0_28, %c0_29], %102 {strides = array<i32>} : memref<8x8x32xf32, #tpu.memory_space<vmem>>, vector<1x8x32xf32>,
    %103 = vector.extract_strided_slice %11 {offsets = [24, 0], sizes = [8, 128], strides = [1, 1]} : vector<64x128xf32> to vector<8x128xf32>
    %104 = arith.truncf %99 : vector<8x32xf32> to vector<8x32xbf16>
    %cst_30 = arith.constant dense<0.000000e+00> : vector<8x128xf32>
    %105 = tpu.matmul %104, %33, %cst_30 {dimension_numbers = #tpu.dot_dimension_numbers<[1], [0], [0], [1], [0, 0, 1, 1], [], []>} : vector<8x32xbf16>, vector<32x128xbf16>, vector<8x128xf32> -> vector<8x128xf32>
    %106 = arith.addf %103, %105 : vector<8x128xf32>
    %107 = vector.broadcast %29 : vector<1x128xf32> to vector<8x128xf32>
    %108 = arith.mulf %106, %107 : vector<8x128xf32>
    %109 = math.tanh %108 : vector<8x128xf32>
    %110 = vector.broadcast %29 : vector<1x128xf32> to vector<8x128xf32>
    %111 = arith.mulf %110, %109 : vector<8x128xf32>
    %112 = vector.broadcast %32 : vector<1x128xf32> to vector<8x128xf32>
    %113 = arith.addf %111, %112 : vector<8x128xf32>
    %114 = vector.extract_strided_slice %113 {offsets = [0, 0], sizes = [8, 32], strides = [1, 1]} : vector<8x128xf32> to vector<8x32xf32>
    %115 = vector.extract_strided_slice %113 {offsets = [0, 32], sizes = [8, 32], strides = [1, 1]} : vector<8x128xf32> to vector<8x32xf32>
    %116 = vector.extract_strided_slice %113 {offsets = [0, 64], sizes = [8, 32], strides = [1, 1]} : vector<8x128xf32> to vector<8x32xf32>
    %117 = vector.extract_strided_slice %113 {offsets = [0, 96], sizes = [8, 32], strides = [1, 1]} : vector<8x128xf32> to vector<8x32xf32>
    %118 = arith.mulf %115, %97 : vector<8x32xf32>
    %119 = arith.mulf %114, %116 : vector<8x32xf32>
    %120 = arith.addf %118, %119 : vector<8x32xf32>
    %121 = math.tanh %120 : vector<8x32xf32>
    %122 = arith.mulf %117, %121 : vector<8x32xf32>
    %c3 = arith.constant 3 : index
    %c0_31 = arith.constant 0 : index
    %c0_32 = arith.constant 0 : index
    %123 = vector.load %arg7[%c3, %c0_31, %c0_32] : memref<8x8x32xf32, #tpu.memory_space<vmem>>, vector<1x8x32xf32>
    %124 = vector.shape_cast %123 : vector<1x8x32xf32> to vector<8x32xf32>
    %125 = vector.shape_cast %122 : vector<8x32xf32> to vector<1x8x32xf32>
    tpu.vector_store %arg7[%c3, %c0_31, %c0_32], %125 {strides = array<i32>} : memref<8x8x32xf32, #tpu.memory_space<vmem>>, vector<1x8x32xf32>,
    %126 = vector.extract_strided_slice %11 {offsets = [32, 0], sizes = [8, 128], strides = [1, 1]} : vector<64x128xf32> to vector<8x128xf32>
    %127 = arith.truncf %122 : vector<8x32xf32> to vector<8x32xbf16>
    %cst_33 = arith.constant dense<0.000000e+00> : vector<8x128xf32>
    %128 = tpu.matmul %127, %33, %cst_33 {dimension_numbers = #tpu.dot_dimension_numbers<[1], [0], [0], [1], [0, 0, 1, 1], [], []>} : vector<8x32xbf16>, vector<32x128xbf16>, vector<8x128xf32> -> vector<8x128xf32>
    %129 = arith.addf %126, %128 : vector<8x128xf32>
    %130 = vector.broadcast %29 : vector<1x128xf32> to vector<8x128xf32>
    %131 = arith.mulf %129, %130 : vector<8x128xf32>
    %132 = math.tanh %131 : vector<8x128xf32>
    %133 = vector.broadcast %29 : vector<1x128xf32> to vector<8x128xf32>
    %134 = arith.mulf %133, %132 : vector<8x128xf32>
    %135 = vector.broadcast %32 : vector<1x128xf32> to vector<8x128xf32>
    %136 = arith.addf %134, %135 : vector<8x128xf32>
    %137 = vector.extract_strided_slice %136 {offsets = [0, 0], sizes = [8, 32], strides = [1, 1]} : vector<8x128xf32> to vector<8x32xf32>
    %138 = vector.extract_strided_slice %136 {offsets = [0, 32], sizes = [8, 32], strides = [1, 1]} : vector<8x128xf32> to vector<8x32xf32>
    %139 = vector.extract_strided_slice %136 {offsets = [0, 64], sizes = [8, 32], strides = [1, 1]} : vector<8x128xf32> to vector<8x32xf32>
    %140 = vector.extract_strided_slice %136 {offsets = [0, 96], sizes = [8, 32], strides = [1, 1]} : vector<8x128xf32> to vector<8x32xf32>
    %141 = arith.mulf %138, %120 : vector<8x32xf32>
    %142 = arith.mulf %137, %139 : vector<8x32xf32>
    %143 = arith.addf %141, %142 : vector<8x32xf32>
    %144 = math.tanh %143 : vector<8x32xf32>
    %145 = arith.mulf %140, %144 : vector<8x32xf32>
    %c4 = arith.constant 4 : index
    %c0_34 = arith.constant 0 : index
    %c0_35 = arith.constant 0 : index
    %146 = vector.load %arg7[%c4, %c0_34, %c0_35] : memref<8x8x32xf32, #tpu.memory_space<vmem>>, vector<1x8x32xf32>
    %147 = vector.shape_cast %146 : vector<1x8x32xf32> to vector<8x32xf32>
    %148 = vector.shape_cast %145 : vector<8x32xf32> to vector<1x8x32xf32>
    tpu.vector_store %arg7[%c4, %c0_34, %c0_35], %148 {strides = array<i32>} : memref<8x8x32xf32, #tpu.memory_space<vmem>>, vector<1x8x32xf32>,
    %149 = vector.extract_strided_slice %11 {offsets = [40, 0], sizes = [8, 128], strides = [1, 1]} : vector<64x128xf32> to vector<8x128xf32>
    %150 = arith.truncf %145 : vector<8x32xf32> to vector<8x32xbf16>
    %cst_36 = arith.constant dense<0.000000e+00> : vector<8x128xf32>
    %151 = tpu.matmul %150, %33, %cst_36 {dimension_numbers = #tpu.dot_dimension_numbers<[1], [0], [0], [1], [0, 0, 1, 1], [], []>} : vector<8x32xbf16>, vector<32x128xbf16>, vector<8x128xf32> -> vector<8x128xf32>
    %152 = arith.addf %149, %151 : vector<8x128xf32>
    %153 = vector.broadcast %29 : vector<1x128xf32> to vector<8x128xf32>
    %154 = arith.mulf %152, %153 : vector<8x128xf32>
    %155 = math.tanh %154 : vector<8x128xf32>
    %156 = vector.broadcast %29 : vector<1x128xf32> to vector<8x128xf32>
    %157 = arith.mulf %156, %155 : vector<8x128xf32>
    %158 = vector.broadcast %32 : vector<1x128xf32> to vector<8x128xf32>
    %159 = arith.addf %157, %158 : vector<8x128xf32>
    %160 = vector.extract_strided_slice %159 {offsets = [0, 0], sizes = [8, 32], strides = [1, 1]} : vector<8x128xf32> to vector<8x32xf32>
    %161 = vector.extract_strided_slice %159 {offsets = [0, 32], sizes = [8, 32], strides = [1, 1]} : vector<8x128xf32> to vector<8x32xf32>
    %162 = vector.extract_strided_slice %159 {offsets = [0, 64], sizes = [8, 32], strides = [1, 1]} : vector<8x128xf32> to vector<8x32xf32>
    %163 = vector.extract_strided_slice %159 {offsets = [0, 96], sizes = [8, 32], strides = [1, 1]} : vector<8x128xf32> to vector<8x32xf32>
    %164 = arith.mulf %161, %143 : vector<8x32xf32>
    %165 = arith.mulf %160, %162 : vector<8x32xf32>
    %166 = arith.addf %164, %165 : vector<8x32xf32>
    %167 = math.tanh %166 : vector<8x32xf32>
    %168 = arith.mulf %163, %167 : vector<8x32xf32>
    %c5 = arith.constant 5 : index
    %c0_37 = arith.constant 0 : index
    %c0_38 = arith.constant 0 : index
    %169 = vector.load %arg7[%c5, %c0_37, %c0_38] : memref<8x8x32xf32, #tpu.memory_space<vmem>>, vector<1x8x32xf32>
    %170 = vector.shape_cast %169 : vector<1x8x32xf32> to vector<8x32xf32>
    %171 = vector.shape_cast %168 : vector<8x32xf32> to vector<1x8x32xf32>
    tpu.vector_store %arg7[%c5, %c0_37, %c0_38], %171 {strides = array<i32>} : memref<8x8x32xf32, #tpu.memory_space<vmem>>, vector<1x8x32xf32>,
    %172 = vector.extract_strided_slice %11 {offsets = [48, 0], sizes = [8, 128], strides = [1, 1]} : vector<64x128xf32> to vector<8x128xf32>
    %173 = arith.truncf %168 : vector<8x32xf32> to vector<8x32xbf16>
    %cst_39 = arith.constant dense<0.000000e+00> : vector<8x128xf32>
    %174 = tpu.matmul %173, %33, %cst_39 {dimension_numbers = #tpu.dot_dimension_numbers<[1], [0], [0], [1], [0, 0, 1, 1], [], []>} : vector<8x32xbf16>, vector<32x128xbf16>, vector<8x128xf32> -> vector<8x128xf32>
    %175 = arith.addf %172, %174 : vector<8x128xf32>
    %176 = vector.broadcast %29 : vector<1x128xf32> to vector<8x128xf32>
    %177 = arith.mulf %175, %176 : vector<8x128xf32>
    %178 = math.tanh %177 : vector<8x128xf32>
    %179 = vector.broadcast %29 : vector<1x128xf32> to vector<8x128xf32>
    %180 = arith.mulf %179, %178 : vector<8x128xf32>
    %181 = vector.broadcast %32 : vector<1x128xf32> to vector<8x128xf32>
    %182 = arith.addf %180, %181 : vector<8x128xf32>
    %183 = vector.extract_strided_slice %182 {offsets = [0, 0], sizes = [8, 32], strides = [1, 1]} : vector<8x128xf32> to vector<8x32xf32>
    %184 = vector.extract_strided_slice %182 {offsets = [0, 32], sizes = [8, 32], strides = [1, 1]} : vector<8x128xf32> to vector<8x32xf32>
    %185 = vector.extract_strided_slice %182 {offsets = [0, 64], sizes = [8, 32], strides = [1, 1]} : vector<8x128xf32> to vector<8x32xf32>
    %186 = vector.extract_strided_slice %182 {offsets = [0, 96], sizes = [8, 32], strides = [1, 1]} : vector<8x128xf32> to vector<8x32xf32>
    %187 = arith.mulf %184, %166 : vector<8x32xf32>
    %188 = arith.mulf %183, %185 : vector<8x32xf32>
    %189 = arith.addf %187, %188 : vector<8x32xf32>
    %190 = math.tanh %189 : vector<8x32xf32>
    %191 = arith.mulf %186, %190 : vector<8x32xf32>
    %c6 = arith.constant 6 : index
    %c0_40 = arith.constant 0 : index
    %c0_41 = arith.constant 0 : index
    %192 = vector.load %arg7[%c6, %c0_40, %c0_41] : memref<8x8x32xf32, #tpu.memory_space<vmem>>, vector<1x8x32xf32>
    %193 = vector.shape_cast %192 : vector<1x8x32xf32> to vector<8x32xf32>
    %194 = vector.shape_cast %191 : vector<8x32xf32> to vector<1x8x32xf32>
    tpu.vector_store %arg7[%c6, %c0_40, %c0_41], %194 {strides = array<i32>} : memref<8x8x32xf32, #tpu.memory_space<vmem>>, vector<1x8x32xf32>,
    %195 = vector.extract_strided_slice %11 {offsets = [56, 0], sizes = [8, 128], strides = [1, 1]} : vector<64x128xf32> to vector<8x128xf32>
    %196 = arith.truncf %191 : vector<8x32xf32> to vector<8x32xbf16>
    %cst_42 = arith.constant dense<0.000000e+00> : vector<8x128xf32>
    %197 = tpu.matmul %196, %33, %cst_42 {dimension_numbers = #tpu.dot_dimension_numbers<[1], [0], [0], [1], [0, 0, 1, 1], [], []>} : vector<8x32xbf16>, vector<32x128xbf16>, vector<8x128xf32> -> vector<8x128xf32>
    %198 = arith.addf %195, %197 : vector<8x128xf32>
    %199 = vector.broadcast %29 : vector<1x128xf32> to vector<8x128xf32>
    %200 = arith.mulf %198, %199 : vector<8x128xf32>
    %201 = math.tanh %200 : vector<8x128xf32>
    %202 = vector.broadcast %29 : vector<1x128xf32> to vector<8x128xf32>
    %203 = arith.mulf %202, %201 : vector<8x128xf32>
    %204 = vector.broadcast %32 : vector<1x128xf32> to vector<8x128xf32>
    %205 = arith.addf %203, %204 : vector<8x128xf32>
    %206 = vector.extract_strided_slice %205 {offsets = [0, 0], sizes = [8, 32], strides = [1, 1]} : vector<8x128xf32> to vector<8x32xf32>
    %207 = vector.extract_strided_slice %205 {offsets = [0, 32], sizes = [8, 32], strides = [1, 1]} : vector<8x128xf32> to vector<8x32xf32>
    %208 = vector.extract_strided_slice %205 {offsets = [0, 64], sizes = [8, 32], strides = [1, 1]} : vector<8x128xf32> to vector<8x32xf32>
    %209 = vector.extract_strided_slice %205 {offsets = [0, 96], sizes = [8, 32], strides = [1, 1]} : vector<8x128xf32> to vector<8x32xf32>
    %210 = arith.mulf %207, %189 : vector<8x32xf32>
    %211 = arith.mulf %206, %208 : vector<8x32xf32>
    %212 = arith.addf %210, %211 : vector<8x32xf32>
    %213 = math.tanh %212 : vector<8x32xf32>
    %214 = arith.mulf %209, %213 : vector<8x32xf32>
    %c7 = arith.constant 7 : index
    %c0_43 = arith.constant 0 : index
    %c0_44 = arith.constant 0 : index
    %215 = vector.load %arg7[%c7, %c0_43, %c0_44] : memref<8x8x32xf32, #tpu.memory_space<vmem>>, vector<1x8x32xf32>
    %216 = vector.shape_cast %215 : vector<1x8x32xf32> to vector<8x32xf32>
    %217 = vector.shape_cast %214 : vector<8x32xf32> to vector<1x8x32xf32>
    tpu.vector_store %arg7[%c7, %c0_43, %c0_44], %217 {strides = array<i32>} : memref<8x8x32xf32, #tpu.memory_space<vmem>>, vector<1x8x32xf32>,
    %c0_45 = arith.constant 0 : index
    %c0_46 = arith.constant 0 : index
    %218 = vector.load %arg8[%c0_45, %c0_46] : memref<8x32xf32, #tpu.memory_space<vmem>>, vector<8x32xf32>
    tpu.vector_store %arg8[%c0_45, %c0_46], %214 {strides = array<i32>} : memref<8x32xf32, #tpu.memory_space<vmem>>, vector<8x32xf32>,
    %c0_47 = arith.constant 0 : index
    %c0_48 = arith.constant 0 : index
    %219 = vector.load %arg9[%c0_47, %c0_48] : memref<8x32xf32, #tpu.memory_space<vmem>>, vector<8x32xf32>
    tpu.vector_store %arg9[%c0_47, %c0_48], %212 {strides = array<i32>} : memref<8x32xf32, #tpu.memory_space<vmem>>, vector<8x32xf32>,
    return
  }
}

</mosaic_0001>

<llo_original>
// kernel: tpu_custom_call.1
$region0: #{tpu_custom_call.1}
  #allocation0 [shape = 'u32[]', space=smem, size = 0x4, offset = 0x4, fixed_abs, tag = 'smem constant byte address 0x4 - core index']
  #allocation1 [shape = 'u32[144,128]{1,0:T(1,128)}', space=vmem, size = 0x12000, scoped, tag = 'internal scratch']
  %s0 = inlined_call_operand.vmem [shape: s32[64,1], index: 0, kind: input, shape index: {}]
  %s1 = inlined_call_operand.vmem [shape: bf16[8,16], index: 1, kind: input, shape index: {}]
  %s2 = inlined_call_operand.vmem [shape: bf16[30,128], index: 2, kind: input, shape index: {}]
  %s3 = inlined_call_operand.vmem [shape: f32[1,128], index: 3, kind: input, shape index: {}]
  %s4 = inlined_call_operand.vmem [shape: bf16[16,32], index: 4, kind: input, shape index: {}]
  %s5 = inlined_call_operand.vmem [shape: f32[1,32], index: 5, kind: input, shape index: {}]
  %s6 = inlined_call_operand.vmem [shape: bf16[32,128], index: 6, kind: input, shape index: {}]
  %s7 = inlined_call_operand.hbm [shape: f32[8,8,32], index: 7, kind: output, shape index: {0}]
  %s8 = inlined_call_operand.hbm [shape: f32[8,32], index: 8, kind: output, shape index: {1}]
  %s9 = inlined_call_operand.hbm [shape: f32[8,32], index: 9, kind: output, shape index: {2}]
  %10 = xla_tuple %s7, %s8, %s9
  %s11 = sld [smem:[#allocation0]]
  $region54: #{tpu_custom_call.1} parent=0
    _
  %s13 = ssub.s32 1, %s11
  %s14 = scalar_select 0, %s13, %s11
  $region1: #{tpu_custom_call.1} parent=0
    #allocation2 [shape = 'u8[32768]{0}', space=vmem, size = 0x8000, scoped, tag = 'output window, operand 0, single buffered']
    #allocation3 [shape = 's32[1]{0}', space=sflag, size = 0x4, scoped, tag = 'scoped memory for tpu_custom_call.1']
    #allocation4 [shape = 'u8[4096]{0}', space=vmem, size = 0x1000, scoped, tag = 'output window, operand 1, single buffered']
    #allocation5 [shape = 's32[1]{0}', space=sflag, size = 0x4, scoped, tag = 'scoped memory for tpu_custom_call.1']
    #allocation6 [shape = 'u8[4096]{0}', space=vmem, size = 0x1000, scoped, tag = 'output window, operand 2, single buffered']
    %15 = vsyncpa [#allocation3], 0
    %16 = vsyncpa [#allocation5], 0
    // Predicated region
    $region2: #{tpu_custom_call.1} parent=1 // pred_check
      _
    $region3: #{tpu_custom_call.1} parent=1 // pred_check_branch
      %18 = sbr.rel (0) target = $region5
    $region4: #{tpu_custom_call.1} parent=1 // pred_region
      _
    $region5: #{tpu_custom_call.1} parent=1 // pred_fallthru
      _
    // Predicated region
    $region6: #{tpu_custom_call.1} parent=1 // pred_check
      _
    $region7: #{tpu_custom_call.1} parent=1 // pred_check_branch
      %20 = sbr.rel (0) target = $region9
    $region8: #{tpu_custom_call.1} parent=1 // pred_region
      _
    $region9: #{tpu_custom_call.1} parent=1 // pred_fallthru
      _
    // Predicated region
    $region10: #{tpu_custom_call.1} parent=1 // pred_check
      _
    $region11: #{tpu_custom_call.1} parent=1 // pred_check_branch
      %22 = sbr.rel (0) target = $region13
    $region12: #{tpu_custom_call.1} parent=1 // pred_region
      _
    $region13: #{tpu_custom_call.1} parent=1 // pred_fallthru
      _
    // Predicated region
    $region14: #{tpu_custom_call.1} parent=1 // pred_check
      _
    $region15: #{tpu_custom_call.1} parent=1 // pred_check_branch
      %24 = sbr.rel (0) target = $region17
    $region16: #{tpu_custom_call.1} parent=1 // pred_region
      _
    $region17: #{tpu_custom_call.1} parent=1 // pred_fallthru
      _
    // Predicated region
    $region18: #{tpu_custom_call.1} parent=1 // pred_check
      _
    $region19: #{tpu_custom_call.1} parent=1 // pred_check_branch
      %26 = sbr.rel (0) target = $region21
    $region20: #{tpu_custom_call.1} parent=1 // pred_region
      _
    $region21: #{tpu_custom_call.1} parent=1 // pred_fallthru
      _
    // Predicated region
    $region22: #{tpu_custom_call.1} parent=1 // pred_check
      _
    $region23: #{tpu_custom_call.1} parent=1 // pred_check_branch
      %28 = sbr.rel (0) target = $region25
    $region24: #{tpu_custom_call.1} parent=1 // pred_region
      _
    $region25: #{tpu_custom_call.1} parent=1 // pred_fallthru
      _
    // Predicated region
    $region26: #{tpu_custom_call.1} parent=1 // pred_check
      _
    $region27: #{tpu_custom_call.1} parent=1 // pred_check_branch
      %30 = sbr.rel (0) target = $region29
    $region28: #{tpu_custom_call.1} parent=1 // pred_region
      _
    $region29: #{tpu_custom_call.1} parent=1 // pred_fallthru
      _
    %v32 = vld [vmem:[%s0] sm:$0xff]
    %v33 = vld [vmem:[%s0 + $0x8] sm:$0xff]
    %v34 = vld [vmem:[%s0 + $0x10] sm:$0xff]
    %v35 = vld [vmem:[%s0 + $0x18] sm:$0xff]
    %v36 = vld [vmem:[%s0 + $0x20] sm:$0xff]
    %v37 = vld [vmem:[%s0 + $0x28] sm:$0xff]
    %v38 = vld [vmem:[%s0 + $0x30] sm:$0xff]
    %v39 = vld [vmem:[%s0 + $0x38] sm:$0xff]
    %v40 = vlaneseq
    %v41 = vand.u32 %v40, 127
    %42 = vset.pattern.permute.xlu0 0
    %43 = vperm.xlu0 %42, %v32
    %v44 = vpop.permute.xlu0 %43
    %45 = vset.pattern.permute.xlu0 0
    %46 = vperm.xlu0 %45, %v33
    %v47 = vpop.permute.xlu0 %46
    %48 = vset.pattern.permute.xlu0 0
    %49 = vperm.xlu0 %48, %v34
    %v50 = vpop.permute.xlu0 %49
    %51 = vset.pattern.permute.xlu0 0
    %52 = vperm.xlu0 %51, %v35
    %v53 = vpop.permute.xlu0 %52
    %54 = vset.pattern.permute.xlu0 0
    %55 = vperm.xlu0 %54, %v36
    %v56 = vpop.permute.xlu0 %55
    %57 = vset.pattern.permute.xlu0 0
    %58 = vperm.xlu0 %57, %v37
    %v59 = vpop.permute.xlu0 %58
    %60 = vset.pattern.permute.xlu0 0
    %61 = vperm.xlu0 %60, %v38
    %v62 = vpop.permute.xlu0 %61
    %63 = vset.pattern.permute.xlu0 0
    %64 = vperm.xlu0 %63, %v39
    %v65 = vpop.permute.xlu0 %64
    %vm66 = vcmp.eq.s32.totalorder %v44, %v41
    %vm67 = vcmp.eq.s32.totalorder %v47, %v41
    %vm68 = vcmp.eq.s32.totalorder %v50, %v41
    %vm69 = vcmp.eq.s32.totalorder %v53, %v41
    %vm70 = vcmp.eq.s32.totalorder %v56, %v41
    %vm71 = vcmp.eq.s32.totalorder %v59, %v41
    %vm72 = vcmp.eq.s32.totalorder %v62, %v41
    %vm73 = vcmp.eq.s32.totalorder %v65, %v41
    %v74 = vsel %vm66, 1, 0
    %v75 = vsel %vm67, 1, 0
    %v76 = vsel %vm68, 1, 0
    %v77 = vsel %vm69, 1, 0
    %v78 = vsel %vm70, 1, 0
    %v79 = vsel %vm71, 1, 0
    %v80 = vsel %vm72, 1, 0
    %v81 = vsel %vm73, 1, 0
    %v82 = vcvt.s32.f32 %v74
    %v83 = vcvt.s32.f32 %v75
    %v84 = vcvt.s32.f32 %v76
    %v85 = vcvt.s32.f32 %v77
    %v86 = vcvt.s32.f32 %v78
    %v87 = vcvt.s32.f32 %v79
    %v88 = vcvt.s32.f32 %v80
    %v89 = vcvt.s32.f32 %v81
    %v90 = vpack.c.bf16 %v83, %v82
    %v91 = vpack.c.bf16 %v85, %v84
    %v92 = vpack.c.bf16 %v87, %v86
    %v93 = vpack.c.bf16 %v89, %v88
    %v94 = vld [vmem:[%s2] sm:$0xf]
    %v95 = vld [vmem:[%s2 + $0x4] sm:$0xf]
    %v96 = vld [vmem:[%s2 + $0x8] sm:$0xf]
    %v97 = vld [vmem:[%s2 + $0xc] sm:$0x7]
    %v98 = vld [vmem:[%s3] sm:$0x1]
    %v100 = vlaneseq
    %v101 = vshrl.u32 %v100, 7
    %v102 = vsub.s32 0, %v101
    %v103 = vrot.slane %v98, %v102
    %v109 = vunpack.c.l.b16 %v94
    %v110 = vunpack.c.l.b16 %v95
    %v111 = vunpack.c.l.b16 %v96
    %v112 = vunpack.c.l.b16 %v97
    %v113 = vpack.c.b16 %v110, %v109
    %v114 = vpack.c.b16 %v112, %v111
    %vm116 = vcmask 244736
    %v118 = vsel %vm116, %v90, 0
    %v121 = vsel %vm116, %v91, 0
    %v124 = vsel %vm116, %v92, 0
    %v127 = vsel %vm116, %v93, 0
    %vm129 = vcmask 1046528
    %v131 = vsel %vm129, %v114, 0
    %133 = vmatprep.subr.bf16.mxu0 0
    %134 = vmatpush1.bf16.msra.mxu0 0
    %135 = vmatprep.subr.bf16.mxu0 0
    %136 = vmatpush1.bf16.msra.mxu0 0
    %137 = vmatprep.subr.bf16.mxu0 0
    %138 = vmatpush1.bf16.msra.mxu0 0
    %139 = vmatprep.subr.bf16.mxu0 0
    %140 = vmatpush1.bf16.msra.mxu0 0
    %141 = vmatprep.subr.bf16.mxu0 0
    %142 = vmatpush1.bf16.msra.mxu0 0
    %143 = vmatprep.subr.bf16.mxu0 0
    %144 = vmatpush1.bf16.msra.mxu0 0
    %145 = vmatprep.subr.bf16.mxu0 0
    %146 = vmatpush1.bf16.msra.mxu0 %v131
    %147 = vmatprep.subr.bf16.mxu0 0
    %148 = vmatpush1.bf16.msra.mxu0 %v113
    %149 = vmatprep.subr.bf16.mxu0 0
    %150 = vmatpush2.bf16.msra.mxu0 0
    %151 = vmatprep.subr.bf16.mxu0 0
    %152 = vmatpush2.bf16.msra.mxu0 0
    %153 = vmatprep.subr.bf16.mxu0 0
    %154 = vmatpush2.bf16.msra.mxu0 0
    %155 = vmatprep.subr.bf16.mxu0 0
    %156 = vmatpush2.bf16.msra.mxu0 0
    %157 = vmatprep.subr.bf16.mxu0 0
    %158 = vmatpush2.bf16.msra.mxu0 0
    %159 = vmatprep.subr.bf16.mxu0 0
    %160 = vmatpush2.bf16.msra.mxu0 0
    %161 = vmatprep.subr.bf16.mxu0 0
    %162 = vmatpush2.bf16.msra.mxu0 0
    %163 = vmatprep.subr.bf16.mxu0 0
    %164 = vmatpush2.bf16.msra.mxu0 0
    %165 = vmatprep.mubr.bf16.mxu0 0
    %166 = vmatmul.mubr.bf16.gmra.mxu0 %v118
    %v167 = vpop.f32.mrf.mxu0
    %v168 = vadd.f32 %v103, %v167
    %v169 = vpop.f32.mrf.mxu0
    %v170 = vpop.f32.mrf.mxu0
    %v171 = vadd.f32 %v103, %v170
    %v172 = vpop.f32.mrf.mxu0
    %173 = vmatprep.mubr.bf16.mxu0 0
    %174 = vmatmul.mubr.bf16.gmra.mxu0 %v121
    %v175 = vpop.f32.mrf.mxu0
    %v176 = vadd.f32 %v103, %v175
    %v177 = vpop.f32.mrf.mxu0
    %v178 = vpop.f32.mrf.mxu0
    %v179 = vadd.f32 %v103, %v178
    %v180 = vpop.f32.mrf.mxu0
    %181 = vmatprep.mubr.bf16.mxu0 0
    %182 = vmatmul.mubr.bf16.gmra.mxu0 %v124
    %v183 = vpop.f32.mrf.mxu0
    %v184 = vadd.f32 %v103, %v183
    %v185 = vpop.f32.mrf.mxu0
    %v186 = vpop.f32.mrf.mxu0
    %v187 = vadd.f32 %v103, %v186
    %v188 = vpop.f32.mrf.mxu0
    %189 = vmatprep.mubr.bf16.mxu0 0
    %190 = vmatmul.mubr.bf16.gmra.mxu0 %v127
    %v191 = vpop.f32.mrf.mxu0
    %v192 = vadd.f32 %v103, %v191
    %v193 = vpop.f32.mrf.mxu0
    %v194 = vpop.f32.mrf.mxu0
    %v195 = vadd.f32 %v103, %v194
    %v196 = vpop.f32.mrf.mxu0
    %197 = vdwg.mxu0
    %v198 = vld [vmem:[%s1] sm:$0xf]
    %v199 = vld [vmem:[%s4] sm:$0xf]
    %v200 = vld [vmem:[%s4 + $0x4] sm:$0xf]
    %v201 = vld [vmem:[%s5] sm:$0x1]
    %v203 = vlaneseq
    %v204 = vshrl.u32 %v203, 7
    %v205 = vsub.s32 0, %v204
    %v206 = vrot.slane %v201, %v205
    %v210 = vunpack.c.l.b16 %v199
    %v211 = vunpack.c.l.b16 %v200
    %v212 = vpack.c.b16 %v211, %v210
    %vm214 = vcmask 130048
    %v216 = vsel %vm214, %v198, 0
    %218 = vmatprep.subr.bf16.mxu0 0
    %219 = vmatpush1.bf16.msra.mxu0 0
    %220 = vmatprep.subr.bf16.mxu0 0
    %221 = vmatpush1.bf16.msra.mxu0 0
    %222 = vmatprep.subr.bf16.mxu0 0
    %223 = vmatpush1.bf16.msra.mxu0 0
    %224 = vmatprep.subr.bf16.mxu0 0
    %225 = vmatpush1.bf16.msra.mxu0 0
    %226 = vmatprep.subr.bf16.mxu0 0
    %227 = vmatpush1.bf16.msra.mxu0 0
    %228 = vmatprep.subr.bf16.mxu0 0
    %229 = vmatpush1.bf16.msra.mxu0 0
    %230 = vmatprep.subr.bf16.mxu0 0
    %231 = vmatpush1.bf16.msra.mxu0 0
    %232 = vmatprep.subr.bf16.mxu0 0
    %233 = vmatpush1.bf16.msra.mxu0 %v212
    %234 = vmatprep.subr.bf16.mxu0 0
    %235 = vmatpush2.bf16.msra.mxu0 0
    %236 = vmatprep.subr.bf16.mxu0 0
    %237 = vmatpush2.bf16.msra.mxu0 0
    %238 = vmatprep.subr.bf16.mxu0 0
    %239 = vmatpush2.bf16.msra.mxu0 0
    %240 = vmatprep.subr.bf16.mxu0 0
    %241 = vmatpush2.bf16.msra.mxu0 0
    %242 = vmatprep.subr.bf16.mxu0 0
    %243 = vmatpush2.bf16.msra.mxu0 0
    %244 = vmatprep.subr.bf16.mxu0 0
    %245 = vmatpush2.bf16.msra.mxu0 0
    %246 = vmatprep.subr.bf16.mxu0 0
    %247 = vmatpush2.bf16.msra.mxu0 0
    %248 = vmatprep.subr.bf16.mxu0 0
    %249 = vmatpush2.bf16.msra.mxu0 0
    %250 = vmatprep.mubr.bf16.mxu0 0
    %251 = vmatmul.mubr.bf16.gmra.mxu0 %v216
    %v252 = vpop.f32.mrf.mxu0
    %v253 = vadd.f32 %v206, %v252
    %v254 = vpop.f32.mrf.mxu0
    %v255 = vpop.f32.mrf.mxu0
    %v256 = vpop.f32.mrf.mxu0
    %257 = vdwg.mxu0
    %v258 = vmax.f32 %v253, 0.0
    %vm259 = vcmp.ge.s32.totalorder %v41, 64
    %vm260 = vcmp.lt.s32.totalorder %v41, 96
    %vm261 = vmand %vm259, %vm260
    %v262 = vsel %vm261, 1.0, 0.5
    %v263 = vsel %vm261, 0.0, 0.5
    %v264 = vld [vmem:[%s6] sm:$0xf]
    %v265 = vld [vmem:[%s6 + $0x4] sm:$0xf]
    %v266 = vld [vmem:[%s6 + $0x8] sm:$0xf]
    %v267 = vld [vmem:[%s6 + $0xc] sm:$0xf]
    %v268 = vpack.c.bf16 %v258, %v258
    %v273 = vunpack.c.l.b16 %v264
    %v274 = vunpack.c.l.b16 %v265
    %v275 = vunpack.c.l.b16 %v266
    %v276 = vunpack.c.l.b16 %v267
    %v277 = vpack.c.b16 %v274, %v273
    %v278 = vpack.c.b16 %v276, %v275
    %vm281 = vcmask 261120
    %v283 = vsel %vm281, %v268, 0
    %285 = vmatprep.subr.bf16.mxu0 0
    %286 = vmatpush1.bf16.msra.mxu0 0
    %287 = vmatprep.subr.bf16.mxu0 0
    %288 = vmatpush1.bf16.msra.mxu0 0
    %289 = vmatprep.subr.bf16.mxu0 0
    %290 = vmatpush1.bf16.msra.mxu0 0
    %291 = vmatprep.subr.bf16.mxu0 0
    %292 = vmatpush1.bf16.msra.mxu0 0
    %293 = vmatprep.subr.bf16.mxu0 0
    %294 = vmatpush1.bf16.msra.mxu0 0
    %295 = vmatprep.subr.bf16.mxu0 0
    %296 = vmatpush1.bf16.msra.mxu0 0
    %297 = vmatprep.subr.bf16.mxu0 0
    %298 = vmatpush1.bf16.msra.mxu0 %v278
    %299 = vmatprep.subr.bf16.mxu0 0
    %300 = vmatpush1.bf16.msra.mxu0 %v277
    %301 = vmatprep.subr.bf16.mxu0 0
    %302 = vmatpush2.bf16.msra.mxu0 0
    %303 = vmatprep.subr.bf16.mxu0 0
    %304 = vmatpush2.bf16.msra.mxu0 0
    %305 = vmatprep.subr.bf16.mxu0 0
    %306 = vmatpush2.bf16.msra.mxu0 0
    %307 = vmatprep.subr.bf16.mxu0 0
    %308 = vmatpush2.bf16.msra.mxu0 0
    %309 = vmatprep.subr.bf16.mxu0 0
    %310 = vmatpush2.bf16.msra.mxu0 0
    %311 = vmatprep.subr.bf16.mxu0 0
    %312 = vmatpush2.bf16.msra.mxu0 0
    %313 = vmatprep.subr.bf16.mxu0 0
    %314 = vmatpush2.bf16.msra.mxu0 0
    %315 = vmatprep.subr.bf16.mxu0 0
    %316 = vmatpush2.bf16.msra.mxu0 0
    %317 = vmatprep.mubr.bf16.mxu0 0
    %318 = vmatmul.mubr.bf16.gmra.mxu0 %v283
    %v319 = vpop.f32.mrf.mxu0
    %v320 = vadd.f32 0.0, %v319
    %v321 = vpop.f32.mrf.mxu0
    %v322 = vpop.f32.mrf.mxu0
    %v323 = vpop.f32.mrf.mxu0
    %324 = vdwg.mxu0
    %v325 = vadd.f32 %v168, %v320
    %v326 = vmul.f32 %v325, %v262
    %v327 = vtanh.pop %v326
    %v328 = vmul.f32 %v262, %v327
    %v329 = vadd.f32 %v328, %v263
    %v330 = vmul.f32 %v329, 0.0
    %332 = vrot.lane.b32.xlu0 %v329, 64
    %v333 = vpop.permute.xlu0 %332
    %v335 = vmul.f32 %v329, %v333
    %337 = vrot.lane.b32.xlu0 %v335, 32
    %v338 = vpop.permute.xlu0 %337
    %v340 = vadd.f32 %v330, %v338
    %v341 = vtanh.pop %v340
    %343 = vrot.lane.b32.xlu0 %v341, 64
    %v344 = vpop.permute.xlu0 %343
    %v346 = vmul.f32 %v329, %v344
    %348 = vrot.lane.b32.xlu0 %v346, 32
    %v349 = vpop.permute.xlu0 %348
    %351 = vst.msk [vmem:[#allocation2] sm:$0xff] %vm281, %v349
    %v352 = vpack.c.bf16 %v346, %v346
    %354 = vrot.lane.b32.xlu0 %v352, 32
    %v355 = vpop.permute.xlu0 %354
    %v357 = vsel %vm281, %v355, 0
    %359 = vmatprep.subr.bf16.mxu0 0
    %360 = vmatpush1.bf16.msra.mxu0 0
    %361 = vmatprep.subr.bf16.mxu0 0
    %362 = vmatpush1.bf16.msra.mxu0 0
    %363 = vmatprep.subr.bf16.mxu0 0
    %364 = vmatpush1.bf16.msra.mxu0 0
    %365 = vmatprep.subr.bf16.mxu0 0
    %366 = vmatpush1.bf16.msra.mxu0 0
    %367 = vmatprep.subr.bf16.mxu0 0
    %368 = vmatpush1.bf16.msra.mxu0 0
    %369 = vmatprep.subr.bf16.mxu0 0
    %370 = vmatpush1.bf16.msra.mxu0 0
    %371 = vmatprep.subr.bf16.mxu0 0
    %372 = vmatpush1.bf16.msra.mxu0 %v278
    %373 = vmatprep.subr.bf16.mxu0 0
    %374 = vmatpush1.bf16.msra.mxu0 %v277
    %375 = vmatprep.subr.bf16.mxu0 0
    %376 = vmatpush2.bf16.msra.mxu0 0
    %377 = vmatprep.subr.bf16.mxu0 0
    %378 = vmatpush2.bf16.msra.mxu0 0
    %379 = vmatprep.subr.bf16.mxu0 0
    %380 = vmatpush2.bf16.msra.mxu0 0
    %381 = vmatprep.subr.bf16.mxu0 0
    %382 = vmatpush2.bf16.msra.mxu0 0
    %383 = vmatprep.subr.bf16.mxu0 0
    %384 = vmatpush2.bf16.msra.mxu0 0
    %385 = vmatprep.subr.bf16.mxu0 0
    %386 = vmatpush2.bf16.msra.mxu0 0
    %387 = vmatprep.subr.bf16.mxu0 0
    %388 = vmatpush2.bf16.msra.mxu0 0
    %389 = vmatprep.subr.bf16.mxu0 0
    %390 = vmatpush2.bf16.msra.mxu0 0
    %391 = vmatprep.mubr.bf16.mxu0 0
    %392 = vmatmul.mubr.bf16.gmra.mxu0 %v357
    %v393 = vpop.f32.mrf.mxu0
    %v394 = vadd.f32 0.0, %v393
    %v395 = vpop.f32.mrf.mxu0
    %v396 = vpop.f32.mrf.mxu0
    %v397 = vpop.f32.mrf.mxu0
    %398 = vdwg.mxu0
    %v399 = vadd.f32 %v171, %v394
    %v400 = vmul.f32 %v399, %v262
    %v401 = vtanh.pop %v400
    %v402 = vmul.f32 %v262, %v401
    %v403 = vadd.f32 %v402, %v263
    %v404 = vmul.f32 %v403, %v340
    %406 = vrot.lane.b32.xlu0 %v403, 64
    %v407 = vpop.permute.xlu0 %406
    %v409 = vmul.f32 %v403, %v407
    %411 = vrot.lane.b32.xlu0 %v409, 32
    %v412 = vpop.permute.xlu0 %411
    %v414 = vadd.f32 %v404, %v412
    %v415 = vtanh.pop %v414
    %417 = vrot.lane.b32.xlu0 %v415, 64
    %v418 = vpop.permute.xlu0 %417
    %v420 = vmul.f32 %v403, %v418
    %422 = vrot.lane.b32.xlu0 %v420, 32
    %v423 = vpop.permute.xlu0 %422
    %s425 = scalar_lea.vmem [#allocation2], 8
    %426 = vst.msk [vmem:[%s425] sm:$0xff] %vm281, %v423
    %v427 = vpack.c.bf16 %v420, %v420
    %429 = vrot.lane.b32.xlu0 %v427, 32
    %v430 = vpop.permute.xlu0 %429
    %v432 = vsel %vm281, %v430, 0
    %434 = vmatprep.subr.bf16.mxu0 0
    %435 = vmatpush1.bf16.msra.mxu0 0
    %436 = vmatprep.subr.bf16.mxu0 0
    %437 = vmatpush1.bf16.msra.mxu0 0
    %438 = vmatprep.subr.bf16.mxu0 0
    %439 = vmatpush1.bf16.msra.mxu0 0
    %440 = vmatprep.subr.bf16.mxu0 0
    %441 = vmatpush1.bf16.msra.mxu0 0
    %442 = vmatprep.subr.bf16.mxu0 0
    %443 = vmatpush1.bf16.msra.mxu0 0
    %444 = vmatprep.subr.bf16.mxu0 0
    %445 = vmatpush1.bf16.msra.mxu0 0
    %446 = vmatprep.subr.bf16.mxu0 0
    %447 = vmatpush1.bf16.msra.mxu0 %v278
    %448 = vmatprep.subr.bf16.mxu0 0
    %449 = vmatpush1.bf16.msra.mxu0 %v277
    %450 = vmatprep.subr.bf16.mxu0 0
    %451 = vmatpush2.bf16.msra.mxu0 0
    %452 = vmatprep.subr.bf16.mxu0 0
    %453 = vmatpush2.bf16.msra.mxu0 0
    %454 = vmatprep.subr.bf16.mxu0 0
    %455 = vmatpush2.bf16.msra.mxu0 0
    %456 = vmatprep.subr.bf16.mxu0 0
    %457 = vmatpush2.bf16.msra.mxu0 0
    %458 = vmatprep.subr.bf16.mxu0 0
    %459 = vmatpush2.bf16.msra.mxu0 0
    %460 = vmatprep.subr.bf16.mxu0 0
    %461 = vmatpush2.bf16.msra.mxu0 0
    %462 = vmatprep.subr.bf16.mxu0 0
    %463 = vmatpush2.bf16.msra.mxu0 0
    %464 = vmatprep.subr.bf16.mxu0 0
    %465 = vmatpush2.bf16.msra.mxu0 0
    %466 = vmatprep.mubr.bf16.mxu0 0
    %467 = vmatmul.mubr.bf16.gmra.mxu0 %v432
    %v468 = vpop.f32.mrf.mxu0
    %v469 = vadd.f32 0.0, %v468
    %v470 = vpop.f32.mrf.mxu0
    %v471 = vpop.f32.mrf.mxu0
    %v472 = vpop.f32.mrf.mxu0
    %473 = vdwg.mxu0
    %v474 = vadd.f32 %v176, %v469
    %v475 = vmul.f32 %v474, %v262
    %v476 = vtanh.pop %v475
    %v477 = vmul.f32 %v262, %v476
    %v478 = vadd.f32 %v477, %v263
    %v479 = vmul.f32 %v478, %v414
    %481 = vrot.lane.b32.xlu0 %v478, 64
    %v482 = vpop.permute.xlu0 %481
    %v484 = vmul.f32 %v478, %v482
    %486 = vrot.lane.b32.xlu0 %v484, 32
    %v487 = vpop.permute.xlu0 %486
    %v489 = vadd.f32 %v479, %v487
    %v490 = vtanh.pop %v489
    %492 = vrot.lane.b32.xlu0 %v490, 64
    %v493 = vpop.permute.xlu0 %492
    %v495 = vmul.f32 %v478, %v493
    %497 = vrot.lane.b32.xlu0 %v495, 32
    %v498 = vpop.permute.xlu0 %497
    %s500 = scalar_lea.vmem [#allocation2], 16
    %501 = vst.msk [vmem:[%s500] sm:$0xff] %vm281, %v498
    %v502 = vpack.c.bf16 %v495, %v495
    %504 = vrot.lane.b32.xlu0 %v502, 32
    %v505 = vpop.permute.xlu0 %504
    %v507 = vsel %vm281, %v505, 0
    %509 = vmatprep.subr.bf16.mxu0 0
    %510 = vmatpush1.bf16.msra.mxu0 0
    %511 = vmatprep.subr.bf16.mxu0 0
    %512 = vmatpush1.bf16.msra.mxu0 0
    %513 = vmatprep.subr.bf16.mxu0 0
    %514 = vmatpush1.bf16.msra.mxu0 0
    %515 = vmatprep.subr.bf16.mxu0 0
    %516 = vmatpush1.bf16.msra.mxu0 0
    %517 = vmatprep.subr.bf16.mxu0 0
    %518 = vmatpush1.bf16.msra.mxu0 0
    %519 = vmatprep.subr.bf16.mxu0 0
    %520 = vmatpush1.bf16.msra.mxu0 0
    %521 = vmatprep.subr.bf16.mxu0 0
    %522 = vmatpush1.bf16.msra.mxu0 %v278
    %523 = vmatprep.subr.bf16.mxu0 0
    %524 = vmatpush1.bf16.msra.mxu0 %v277
    %525 = vmatprep.subr.bf16.mxu0 0
    %526 = vmatpush2.bf16.msra.mxu0 0
    %527 = vmatprep.subr.bf16.mxu0 0
    %528 = vmatpush2.bf16.msra.mxu0 0
    %529 = vmatprep.subr.bf16.mxu0 0
    %530 = vmatpush2.bf16.msra.mxu0 0
    %531 = vmatprep.subr.bf16.mxu0 0
    %532 = vmatpush2.bf16.msra.mxu0 0
    %533 = vmatprep.subr.bf16.mxu0 0
    %534 = vmatpush2.bf16.msra.mxu0 0
    %535 = vmatprep.subr.bf16.mxu0 0
    %536 = vmatpush2.bf16.msra.mxu0 0
    %537 = vmatprep.subr.bf16.mxu0 0
    %538 = vmatpush2.bf16.msra.mxu0 0
    %539 = vmatprep.subr.bf16.mxu0 0
    %540 = vmatpush2.bf16.msra.mxu0 0
    %541 = vmatprep.mubr.bf16.mxu0 0
    %542 = vmatmul.mubr.bf16.gmra.mxu0 %v507
    %v543 = vpop.f32.mrf.mxu0
    %v544 = vadd.f32 0.0, %v543
    %v545 = vpop.f32.mrf.mxu0
    %v546 = vpop.f32.mrf.mxu0
    %v547 = vpop.f32.mrf.mxu0
    %548 = vdwg.mxu0
    %v549 = vadd.f32 %v179, %v544
    %v550 = vmul.f32 %v549, %v262
    %v551 = vtanh.pop %v550
    %v552 = vmul.f32 %v262, %v551
    %v553 = vadd.f32 %v552, %v263
    %v554 = vmul.f32 %v553, %v489
    %556 = vrot.lane.b32.xlu0 %v553, 64
    %v557 = vpop.permute.xlu0 %556
    %v559 = vmul.f32 %v553, %v557
    %561 = vrot.lane.b32.xlu0 %v559, 32
    %v562 = vpop.permute.xlu0 %561
    %v564 = vadd.f32 %v554, %v562
    %v565 = vtanh.pop %v564
    %567 = vrot.lane.b32.xlu0 %v565, 64
    %v568 = vpop.permute.xlu0 %567
    %v570 = vmul.f32 %v553, %v568
    %572 = vrot.lane.b32.xlu0 %v570, 32
    %v573 = vpop.permute.xlu0 %572
    %s575 = scalar_lea.vmem [#allocation2], 24
    %576 = vst.msk [vmem:[%s575] sm:$0xff] %vm281, %v573
    %v577 = vpack.c.bf16 %v570, %v570
    %579 = vrot.lane.b32.xlu0 %v577, 32
    %v580 = vpop.permute.xlu0 %579
    %v582 = vsel %vm281, %v580, 0
    %584 = vmatprep.subr.bf16.mxu0 0
    %585 = vmatpush1.bf16.msra.mxu0 0
    %586 = vmatprep.subr.bf16.mxu0 0
    %587 = vmatpush1.bf16.msra.mxu0 0
    %588 = vmatprep.subr.bf16.mxu0 0
    %589 = vmatpush1.bf16.msra.mxu0 0
    %590 = vmatprep.subr.bf16.mxu0 0
    %591 = vmatpush1.bf16.msra.mxu0 0
    %592 = vmatprep.subr.bf16.mxu0 0
    %593 = vmatpush1.bf16.msra.mxu0 0
    %594 = vmatprep.subr.bf16.mxu0 0
    %595 = vmatpush1.bf16.msra.mxu0 0
    %596 = vmatprep.subr.bf16.mxu0 0
    %597 = vmatpush1.bf16.msra.mxu0 %v278
    %598 = vmatprep.subr.bf16.mxu0 0
    %599 = vmatpush1.bf16.msra.mxu0 %v277
    %600 = vmatprep.subr.bf16.mxu0 0
    %601 = vmatpush2.bf16.msra.mxu0 0
    %602 = vmatprep.subr.bf16.mxu0 0
    %603 = vmatpush2.bf16.msra.mxu0 0
    %604 = vmatprep.subr.bf16.mxu0 0
    %605 = vmatpush2.bf16.msra.mxu0 0
    %606 = vmatprep.subr.bf16.mxu0 0
    %607 = vmatpush2.bf16.msra.mxu0 0
    %608 = vmatprep.subr.bf16.mxu0 0
    %609 = vmatpush2.bf16.msra.mxu0 0
    %610 = vmatprep.subr.bf16.mxu0 0
    %611 = vmatpush2.bf16.msra.mxu0 0
    %612 = vmatprep.subr.bf16.mxu0 0
    %613 = vmatpush2.bf16.msra.mxu0 0
    %614 = vmatprep.subr.bf16.mxu0 0
    %615 = vmatpush2.bf16.msra.mxu0 0
    %616 = vmatprep.mubr.bf16.mxu0 0
    %617 = vmatmul.mubr.bf16.gmra.mxu0 %v582
    %v618 = vpop.f32.mrf.mxu0
    %v619 = vadd.f32 0.0, %v618
    %v620 = vpop.f32.mrf.mxu0
    %v621 = vpop.f32.mrf.mxu0
    %v622 = vpop.f32.mrf.mxu0
    %623 = vdwg.mxu0
    %v624 = vadd.f32 %v184, %v619
    %v625 = vmul.f32 %v624, %v262
    %v626 = vtanh.pop %v625
    %v627 = vmul.f32 %v262, %v626
    %v628 = vadd.f32 %v627, %v263
    %v629 = vmul.f32 %v628, %v564
    %631 = vrot.lane.b32.xlu0 %v628, 64
    %v632 = vpop.permute.xlu0 %631
    %v634 = vmul.f32 %v628, %v632
    %636 = vrot.lane.b32.xlu0 %v634, 32
    %v637 = vpop.permute.xlu0 %636
    %v639 = vadd.f32 %v629, %v637
    %v640 = vtanh.pop %v639
    %642 = vrot.lane.b32.xlu0 %v640, 64
    %v643 = vpop.permute.xlu0 %642
    %v645 = vmul.f32 %v628, %v643
    %647 = vrot.lane.b32.xlu0 %v645, 32
    %v648 = vpop.permute.xlu0 %647
    %s650 = scalar_lea.vmem [#allocation2], 32
    %651 = vst.msk [vmem:[%s650] sm:$0xff] %vm281, %v648
    %v652 = vpack.c.bf16 %v645, %v645
    %654 = vrot.lane.b32.xlu0 %v652, 32
    %v655 = vpop.permute.xlu0 %654
    %v657 = vsel %vm281, %v655, 0
    %659 = vmatprep.subr.bf16.mxu0 0
    %660 = vmatpush1.bf16.msra.mxu0 0
    %661 = vmatprep.subr.bf16.mxu0 0
    %662 = vmatpush1.bf16.msra.mxu0 0
    %663 = vmatprep.subr.bf16.mxu0 0
    %664 = vmatpush1.bf16.msra.mxu0 0
    %665 = vmatprep.subr.bf16.mxu0 0
    %666 = vmatpush1.bf16.msra.mxu0 0
    %667 = vmatprep.subr.bf16.mxu0 0
    %668 = vmatpush1.bf16.msra.mxu0 0
    %669 = vmatprep.subr.bf16.mxu0 0
    %670 = vmatpush1.bf16.msra.mxu0 0
    %671 = vmatprep.subr.bf16.mxu0 0
    %672 = vmatpush1.bf16.msra.mxu0 %v278
    %673 = vmatprep.subr.bf16.mxu0 0
    %674 = vmatpush1.bf16.msra.mxu0 %v277
    %675 = vmatprep.subr.bf16.mxu0 0
    %676 = vmatpush2.bf16.msra.mxu0 0
    %677 = vmatprep.subr.bf16.mxu0 0
    %678 = vmatpush2.bf16.msra.mxu0 0
    %679 = vmatprep.subr.bf16.mxu0 0
    %680 = vmatpush2.bf16.msra.mxu0 0
    %681 = vmatprep.subr.bf16.mxu0 0
    %682 = vmatpush2.bf16.msra.mxu0 0
    %683 = vmatprep.subr.bf16.mxu0 0
    %684 = vmatpush2.bf16.msra.mxu0 0
    %685 = vmatprep.subr.bf16.mxu0 0
    %686 = vmatpush2.bf16.msra.mxu0 0
    %687 = vmatprep.subr.bf16.mxu0 0
    %688 = vmatpush2.bf16.msra.mxu0 0
    %689 = vmatprep.subr.bf16.mxu0 0
    %690 = vmatpush2.bf16.msra.mxu0 0
    %691 = vmatprep.mubr.bf16.mxu0 0
    %692 = vmatmul.mubr.bf16.gmra.mxu0 %v657
    %v693 = vpop.f32.mrf.mxu0
    %v694 = vadd.f32 0.0, %v693
    %v695 = vpop.f32.mrf.mxu0
    %v696 = vpop.f32.mrf.mxu0
    %v697 = vpop.f32.mrf.mxu0
    %698 = vdwg.mxu0
    %v699 = vadd.f32 %v187, %v694
    %v700 = vmul.f32 %v699, %v262
    %v701 = vtanh.pop %v700
    %v702 = vmul.f32 %v262, %v701
    %v703 = vadd.f32 %v702, %v263
    %v704 = vmul.f32 %v703, %v639
    %706 = vrot.lane.b32.xlu0 %v703, 64
    %v707 = vpop.permute.xlu0 %706
    %v709 = vmul.f32 %v703, %v707
    %711 = vrot.lane.b32.xlu0 %v709, 32
    %v712 = vpop.permute.xlu0 %711
    %v714 = vadd.f32 %v704, %v712
    %v715 = vtanh.pop %v714
    %717 = vrot.lane.b32.xlu0 %v715, 64
    %v718 = vpop.permute.xlu0 %717
    %v720 = vmul.f32 %v703, %v718
    %722 = vrot.lane.b32.xlu0 %v720, 32
    %v723 = vpop.permute.xlu0 %722
    %s725 = scalar_lea.vmem [#allocation2], 40
    %726 = vst.msk [vmem:[%s725] sm:$0xff] %vm281, %v723
    %v727 = vpack.c.bf16 %v720, %v720
    %729 = vrot.lane.b32.xlu0 %v727, 32
    %v730 = vpop.permute.xlu0 %729
    %v732 = vsel %vm281, %v730, 0
    %734 = vmatprep.subr.bf16.mxu0 0
    %735 = vmatpush1.bf16.msra.mxu0 0
    %736 = vmatprep.subr.bf16.mxu0 0
    %737 = vmatpush1.bf16.msra.mxu0 0
    %738 = vmatprep.subr.bf16.mxu0 0
    %739 = vmatpush1.bf16.msra.mxu0 0
    %740 = vmatprep.subr.bf16.mxu0 0
    %741 = vmatpush1.bf16.msra.mxu0 0
    %742 = vmatprep.subr.bf16.mxu0 0
    %743 = vmatpush1.bf16.msra.mxu0 0
    %744 = vmatprep.subr.bf16.mxu0 0
    %745 = vmatpush1.bf16.msra.mxu0 0
    %746 = vmatprep.subr.bf16.mxu0 0
    %747 = vmatpush1.bf16.msra.mxu0 %v278
    %748 = vmatprep.subr.bf16.mxu0 0
    %749 = vmatpush1.bf16.msra.mxu0 %v277
    %750 = vmatprep.subr.bf16.mxu0 0
    %751 = vmatpush2.bf16.msra.mxu0 0
    %752 = vmatprep.subr.bf16.mxu0 0
    %753 = vmatpush2.bf16.msra.mxu0 0
    %754 = vmatprep.subr.bf16.mxu0 0
    %755 = vmatpush2.bf16.msra.mxu0 0
    %756 = vmatprep.subr.bf16.mxu0 0
    %757 = vmatpush2.bf16.msra.mxu0 0
    %758 = vmatprep.subr.bf16.mxu0 0
    %759 = vmatpush2.bf16.msra.mxu0 0
    %760 = vmatprep.subr.bf16.mxu0 0
    %761 = vmatpush2.bf16.msra.mxu0 0
    %762 = vmatprep.subr.bf16.mxu0 0
    %763 = vmatpush2.bf16.msra.mxu0 0
    %764 = vmatprep.subr.bf16.mxu0 0
    %765 = vmatpush2.bf16.msra.mxu0 0
    %766 = vmatprep.mubr.bf16.mxu0 0
    %767 = vmatmul.mubr.bf16.gmra.mxu0 %v732
    %v768 = vpop.f32.mrf.mxu0
    %v769 = vadd.f32 0.0, %v768
    %v770 = vpop.f32.mrf.mxu0
    %v771 = vpop.f32.mrf.mxu0
    %v772 = vpop.f32.mrf.mxu0
    %773 = vdwg.mxu0
    %v774 = vadd.f32 %v192, %v769
    %v775 = vmul.f32 %v774, %v262
    %v776 = vtanh.pop %v775
    %v777 = vmul.f32 %v262, %v776
    %v778 = vadd.f32 %v777, %v263
    %v779 = vmul.f32 %v778, %v714
    %781 = vrot.lane.b32.xlu0 %v778, 64
    %v782 = vpop.permute.xlu0 %781
    %v784 = vmul.f32 %v778, %v782
    %786 = vrot.lane.b32.xlu0 %v784, 32
    %v787 = vpop.permute.xlu0 %786
    %v789 = vadd.f32 %v779, %v787
    %v790 = vtanh.pop %v789
    %792 = vrot.lane.b32.xlu0 %v790, 64
    %v793 = vpop.permute.xlu0 %792
    %v795 = vmul.f32 %v778, %v793
    %797 = vrot.lane.b32.xlu0 %v795, 32
    %v798 = vpop.permute.xlu0 %797
    %s800 = scalar_lea.vmem [#allocation2], 48
    %801 = vst.msk [vmem:[%s800] sm:$0xff] %vm281, %v798
    %v802 = vpack.c.bf16 %v795, %v795
    %804 = vrot.lane.b32.xlu0 %v802, 32
    %v805 = vpop.permute.xlu0 %804
    %v807 = vsel %vm281, %v805, 0
    %809 = vmatprep.subr.bf16.mxu0 0
    %810 = vmatpush1.bf16.msra.mxu0 0
    %811 = vmatprep.subr.bf16.mxu0 0
    %812 = vmatpush1.bf16.msra.mxu0 0
    %813 = vmatprep.subr.bf16.mxu0 0
    %814 = vmatpush1.bf16.msra.mxu0 0
    %815 = vmatprep.subr.bf16.mxu0 0
    %816 = vmatpush1.bf16.msra.mxu0 0
    %817 = vmatprep.subr.bf16.mxu0 0
    %818 = vmatpush1.bf16.msra.mxu0 0
    %819 = vmatprep.subr.bf16.mxu0 0
    %820 = vmatpush1.bf16.msra.mxu0 0
    %821 = vmatprep.subr.bf16.mxu0 0
    %822 = vmatpush1.bf16.msra.mxu0 %v278
    %823 = vmatprep.subr.bf16.mxu0 0
    %824 = vmatpush1.bf16.msra.mxu0 %v277
    %825 = vmatprep.subr.bf16.mxu0 0
    %826 = vmatpush2.bf16.msra.mxu0 0
    %827 = vmatprep.subr.bf16.mxu0 0
    %828 = vmatpush2.bf16.msra.mxu0 0
    %829 = vmatprep.subr.bf16.mxu0 0
    %830 = vmatpush2.bf16.msra.mxu0 0
    %831 = vmatprep.subr.bf16.mxu0 0
    %832 = vmatpush2.bf16.msra.mxu0 0
    %833 = vmatprep.subr.bf16.mxu0 0
    %834 = vmatpush2.bf16.msra.mxu0 0
    %835 = vmatprep.subr.bf16.mxu0 0
    %836 = vmatpush2.bf16.msra.mxu0 0
    %837 = vmatprep.subr.bf16.mxu0 0
    %838 = vmatpush2.bf16.msra.mxu0 0
    %839 = vmatprep.subr.bf16.mxu0 0
    %840 = vmatpush2.bf16.msra.mxu0 0
    %841 = vmatprep.mubr.bf16.mxu0 0
    %842 = vmatmul.mubr.bf16.gmra.mxu0 %v807
    %v843 = vpop.f32.mrf.mxu0
    %v844 = vadd.f32 0.0, %v843
    %v845 = vpop.f32.mrf.mxu0
    %v846 = vpop.f32.mrf.mxu0
    %v847 = vpop.f32.mrf.mxu0
    %848 = vdwg.mxu0
    %v849 = vadd.f32 %v195, %v844
    %v850 = vmul.f32 %v849, %v262
    %v851 = vtanh.pop %v850
    %v852 = vmul.f32 %v262, %v851
    %v853 = vadd.f32 %v852, %v263
    %v854 = vmul.f32 %v853, %v789
    %856 = vrot.lane.b32.xlu0 %v853, 64
    %v857 = vpop.permute.xlu0 %856
    %v859 = vmul.f32 %v853, %v857
    %861 = vrot.lane.b32.xlu0 %v859, 32
    %v862 = vpop.permute.xlu0 %861
    %v864 = vadd.f32 %v854, %v862
    %v865 = vtanh.pop %v864
    %867 = vrot.lane.b32.xlu0 %v865, 64
    %v868 = vpop.permute.xlu0 %867
    %v870 = vmul.f32 %v853, %v868
    %872 = vrot.lane.b32.xlu0 %v870, 32
    %v873 = vpop.permute.xlu0 %872
    %s875 = scalar_lea.vmem [#allocation2], 56
    %876 = vst.msk [vmem:[%s875] sm:$0xff] %vm281, %v873
    %877 = vst.msk [vmem:[#allocation4] sm:$0xff] %vm281, %v873
    %879 = vrot.lane.b32.xlu0 %v864, 96
    %v880 = vpop.permute.xlu0 %879
    %882 = vst.msk [vmem:[#allocation6] sm:$0xff] %vm281, %v880
    // Predicated region
    $region30: #{tpu_custom_call.1} parent=1 // pred_check
      _
    $region31: #{tpu_custom_call.1} parent=1 // pred_check_branch
      %884 = sbr.rel (0) target = $region33
    $region32: #{tpu_custom_call.1} parent=1 // pred_region
      %s886 = ssub.s32 1024, 1024
      %887 = vsyncadd [#allocation3], %s886
      %s888 = sshll.u32 [#allocation2], 4
      %s889 = int_to_ptr.vmem [resolvable:$true] %s888
      %894 = dma.vmem_to_hbm [thread:$0]  %s889, 1024, %s7, [#allocation3], 128, 128, 8
    $region33: #{tpu_custom_call.1} parent=1 // pred_fallthru
      _
    // Predicated region
    $region34: #{tpu_custom_call.1} parent=1 // pred_check
      _
    $region35: #{tpu_custom_call.1} parent=1 // pred_check_branch
      %896 = sbr.rel (0) target = $region37
    $region36: #{tpu_custom_call.1} parent=1 // pred_region
      %s898 = ssub.s32 128, 128
      %899 = vsyncadd [#allocation5], %s898
      %s901 = sshll.u32 [#allocation4], 4
      %s902 = int_to_ptr.vmem [resolvable:$true] %s901
      %904 = dma.vmem_to_hbm [thread:$0]  %s902, 128, %s8, [#allocation5]
    $region37: #{tpu_custom_call.1} parent=1 // pred_fallthru
      _
    // Predicated region
    $region38: #{tpu_custom_call.1} parent=1 // pred_check
      _
    $region39: #{tpu_custom_call.1} parent=1 // pred_check_branch
      %906 = sbr.rel (0) target = $region41
    $region40: #{tpu_custom_call.1} parent=1 // pred_region
      %s908 = ssub.s32 128, 128
      %909 = vsyncadd [#allocation5], %s908
      %s911 = sshll.u32 [#allocation6], 4
      %s912 = int_to_ptr.vmem [resolvable:$true] %s911
      %914 = dma.vmem_to_hbm [thread:$0]  %s912, 128, %s9, [#allocation5]
    $region41: #{tpu_custom_call.1} parent=1 // pred_fallthru
      _
    // Predicated region
    $region42: #{tpu_custom_call.1} parent=1 // pred_check
      _
    $region43: #{tpu_custom_call.1} parent=1 // pred_check_branch
      %916 = sbr.rel (0) target = $region45
    $region44: #{tpu_custom_call.1} parent=1 // pred_region
      %917 = dma.done [#allocation3], 1024
    $region45: #{tpu_custom_call.1} parent=1 // pred_fallthru
      _
    // Predicated region
    $region46: #{tpu_custom_call.1} parent=1 // pred_check
      _
    $region47: #{tpu_custom_call.1} parent=1 // pred_check_branch
      %919 = sbr.rel (0) target = $region49
    $region48: #{tpu_custom_call.1} parent=1 // pred_region
      %920 = dma.done [#allocation5], 128
    $region49: #{tpu_custom_call.1} parent=1 // pred_fallthru
      _
    // Predicated region
    $region50: #{tpu_custom_call.1} parent=1 // pred_check
      _
    $region51: #{tpu_custom_call.1} parent=1 // pred_check_branch
      %922 = sbr.rel (0) target = $region53
    $region52: #{tpu_custom_call.1} parent=1 // pred_region
      %923 = dma.done [#allocation5], 128
    $region53: #{tpu_custom_call.1} parent=1 // pred_fallthru
      _
    %924 = vsyncpa [#allocation3], 1
    %925 = vsyncpa [#allocation5], 1

</llo_original>
